<compile_context>
chip_gen: v7x
topology: tpu7x:2x2x1
jax: 0.10.0
libtpu: 0.0.40
codegen_flags: <defaults>
</compile_context>

<pallas_src>
import math

import jax
import jax.numpy as jnp
from jax import lax
from jax.experimental import pallas as pl
from jax.experimental.pallas import tpu as pltpu

DEFAULT_CODE = ["MAX", "OM1", "OM2", "CM2", "CM3"]
_LANE = 128
_VMEM_LIMIT_BYTES = 32 * 1024 * 1024   # generation-safe scoped-VMEM request


# ----------------------------------------------------------------------------- helpers
def _round_up(a, b):
    return ((a + b - 1) // b) * b


def _min_sublane(dtype):
    # native sublane tile: 8 for 4-byte, 16 for 2-byte, 32 for 1-byte dtypes
    return {4: 8, 2: 16, 1: 32}.get(jnp.dtype(dtype).itemsize, 8)


def _parse_code(code):
    """Mirror the PyTorch module's parsing; unknown codes are silently skipped."""
    entries = []
    for c in code:
        if c == "MAX":
            entries.append(("MAX", None))
        elif c[:2] == "OM":
            entries.append(("OM", int(c[2:])))
        elif c[:2] == "CM":
            entries.append(("CM", int(c[2:])))
    return entries


def _moment_poly(m, s, order):
    """sum_{j=0}^{order} C(order,j) * m[j] * s^(order-j), with m[0] := 1.

    With m[j] = E[(x - shift)^j]:
      s = +shift  ->  E[x^order]           (raw moment)
      s = -m[1]   ->  E[(x - mean)^order]  (central moment)
    Powers of s built with explicit multiplies; exactly-zero Python-float m[j]
    terms are skipped.
    """
    result = m[order]
    spow = s
    for j in range(order - 1, -1, -1):
        mj = m[j] if j >= 1 else 1.0
        if not (isinstance(mj, float) and mj == 0.0):
            result = result + float(math.comb(order, j)) * mj * spow
        if j > 0:
            spow = spow * s
    return result


# ----------------------------------------------------------------------------- kernels
def _make_exact_kernel(entries, N):
    """Single block over N: one shifted power chain (d = x - om1); OM rebuilt from CM."""
    need_max = any(k == "MAX" for k, _ in entries)
    om_orders = sorted({o for k, o in entries if k == "OM"})
    cm_orders = sorted({o for k, o in entries if k == "CM"})
    need_mean = bool(om_orders) or bool(cm_orders)

    needed_central = {o for o in cm_orders if o >= 2}
    for o in om_orders:
        if o >= 2:
            needed_central.update(range(2, o + 1))
    max_order = max(needed_central) if needed_central else 0
    inv_n = 1.0 / N

    def kernel(x_ref, o_ref):
        xf = x_ref[...].astype(jnp.float32)            # (TR, N)

        mx = jnp.max(xf, axis=-1, keepdims=True) if need_max else None

        om1 = None
        m = {1: 0.0}                                    # E[d] == 0 by construction
        if need_mean:
            om1 = jnp.sum(xf, axis=-1, keepdims=True) * inv_n
        if needed_central:
            d = xf - om1                                # single shifted power chain
            cur = d
            for p in range(2, max_order + 1):
                cur = cur * d
                if p in needed_central:
                    m[p] = jnp.sum(cur, axis=-1, keepdims=True) * inv_n

        # Direct per-column stores (no concatenate / lane relayout).
        for col, (kind, order) in enumerate(entries):
            if kind == "MAX":
                stat = mx
            elif kind == "OM":
                stat = om1 if order == 1 else _moment_poly(m, om1, order)
            else:  # CM
                stat = jnp.zeros_like(om1) if order == 1 else m[order]
            o_ref[:, col:col + 1] = stat.astype(o_ref.dtype)

    return kernel


def _make_stream_kernel(entries, N, TN, n_chunks, TR):
    """Streamed over N: lane-dense (TR,128) accumulators, mask only on last chunk."""
    need_max = any(k == "MAX" for k, _ in entries)
    om_orders = sorted({o for k, o in entries if k == "OM"})
    cm_orders = sorted({o for k, o in entries if k == "CM"})
    need_moments = bool(om_orders) or bool(cm_orders)
    max_order = max(om_orders + cm_orders) if need_moments else 0
    inv_n = 1.0 / N
    last_valid = N - (n_chunks - 1) * TN                # in (0, TN]
    needs_mask = last_valid < TN

    scratch = []
    if need_moments:
        scratch.append(pltpu.VMEM((max_order, TR, _LANE), jnp.float32))  # sum((x-shift)^p)
        scratch.append(pltpu.VMEM((TR, 1), jnp.float32))                 # shift (first-strip mean)
    if need_max:
        scratch.append(pltpu.VMEM((TR, _LANE), jnp.float32))             # lane-dense running max

    def kernel(x_ref, o_ref, *scr):
        it = iter(scr)
        pw_acc = next(it) if need_moments else None
        shift_ref = next(it) if need_moments else None
        max_acc = next(it) if need_max else None

        n = pl.program_id(1)

        @pl.when(n == 0)
        def _init():
            if need_moments:
                for p in range(max_order):
                    pw_acc[p] = jnp.zeros((TR, _LANE), jnp.float32)
                # Shift = mean of the first 128-lane strip of chunk 0 (always fully
                # valid since n_chunks >= 2).  Any shift is algebraically correct;
                # a decent estimate minimizes cancellation in the CM reconstruction.
                first = x_ref[:, 0:_LANE].astype(jnp.float32)
                shift_ref[...] = jnp.sum(first, axis=-1, keepdims=True) * (1.0 / _LANE)
            if need_max:
                max_acc[...] = jnp.full((TR, _LANE), -jnp.inf, jnp.float32)

        def accumulate(num_valid):
            """Consume the first `num_valid` (static) lanes of this chunk."""
            full = num_valid // _LANE
            rem = num_valid - full * _LANE
            shift = shift_ref[...] if need_moments else None

            init = []
            if need_max:
                init.append(max_acc[...])
            if need_moments:
                init.extend(pw_acc[p] for p in range(max_order))
            init = tuple(init)

            def strip_update(carry, xs, valid=None):
                carry = list(carry)
                idx = 0
                if need_max:
                    xm = xs if valid is None else jnp.where(valid, xs, -jnp.inf)
                    carry[0] = jnp.maximum(carry[0], xm)
                    idx = 1
                if need_moments:
                    y = xs - shift
                    if valid is not None:
                        y = jnp.where(valid, y, 0.0)
                    cur = y
                    carry[idx] = carry[idx] + y
                    for p in range(2, max_order + 1):
                        cur = cur * y
                        carry[idx + p - 1] = carry[idx + p - 1] + cur
                return tuple(carry)

            carry = init
            if full > 0:
                def body(s, c):
                    start = pl.multiple_of(s * _LANE, _LANE)
                    xs = x_ref[:, pl.ds(start, _LANE)].astype(jnp.float32)
                    return strip_update(c, xs)

                carry = lax.fori_loop(0, full, body, carry, unroll=min(full, 8))

            if rem > 0:  # masked final partial strip (static offset / static rem)
                xs = x_ref[:, full * _LANE:(full + 1) * _LANE].astype(jnp.float32)
                lane = lax.broadcasted_iota(jnp.int32, (TR, _LANE), 1)
                carry = strip_update(carry, xs, valid=lane < rem)

            carry = list(carry)
            idx = 0
            if need_max:
                max_acc[...] = carry[0]
                idx = 1
            if need_moments:
                for p in range(max_order):
                    pw_acc[p] = carry[idx + p]

        if needs_mask:
            @pl.when(n < n_chunks - 1)
            def _():
                accumulate(TN)

            @pl.when(n == n_chunks - 1)
            def _():
                accumulate(last_valid)
        else:
            accumulate(TN)

        @pl.when(n == n_chunks - 1)
        def _finalize():
            shift = None
            m = {}
            neg_m1 = None
            if need_moments:
                shift = shift_ref[...]
                # Single cross-lane reduction per accumulator, once per row tile.
                m = {p: jnp.sum(pw_acc[p - 1], axis=-1, keepdims=True) * inv_n
                     for p in range(1, max_order + 1)}
                neg_m1 = -m[1]
            mx = jnp.max(max_acc[...], axis=-1, keepdims=True) if need_max else None

            for col, (kind, order) in enumerate(entries):
                if kind == "MAX":
                    stat = mx
                elif kind == "OM":
                    stat = _moment_poly(m, shift, order)    # E[x^k]
                else:
                    stat = _moment_poly(m, neg_m1, order)   # E[(x-mean)^k]
                o_ref[:, col:col + 1] = stat.astype(o_ref.dtype)

    return kernel, scratch


# ----------------------------------------------------------------------------- wrapper
def statistician(x, code=DEFAULT_CODE, *, block_elems=1 << 20):
    """Pallas TPU implementation of Statistician.forward.

    x: (B, C, N).  Returns (B, C, K) with one column per recognized code,
    concatenated in code order (same as the PyTorch module).
    """
    B, C, N = x.shape
    entries = _parse_code(code)
    if not entries:
        raise ValueError("no recognized statistic codes")
    K = len(entries)

    R = B * C
    x2 = x.reshape(R, N)
    min_sub = _min_sublane(x.dtype)
    block_elems = max(int(block_elems), min_sub * _LANE)

    # Row-tile cap keeping >= 2 "parallel" tiles whenever possible (v7x: 2 TCs).
    if R >= 2 * min_sub:
        cap2 = _round_up(pl.cdiv(R, 2), min_sub)
    else:
        cap2 = _round_up(R, min_sub)
    R_up = _round_up(R, min_sub)

    def run_exact(TR):
        n_row_tiles = pl.cdiv(R, TR)
        kernel = _make_exact_kernel(entries, N)
        return pl.pallas_call(
            kernel,
            out_shape=jax.ShapeDtypeStruct((R, K), x.dtype),
            grid_spec=pltpu.PrefetchScalarGridSpec(
                num_scalar_prefetch=0,
                grid=(n_row_tiles,),
                in_specs=[pl.BlockSpec((TR, N), lambda r: (r, 0))],
                out_specs=pl.BlockSpec((TR, K), lambda r: (r, 0)),
            ),
            compiler_params=pltpu.CompilerParams(
                dimension_semantics=("parallel",),
                vmem_limit_bytes=_VMEM_LIMIT_BYTES,
            ),
        )(x2)

    if N * min_sub <= block_elems:
        # Exact single-pass path: whole N in one block, as many rows as fit the budget.
        fit = max(min_sub, (block_elems // N) // min_sub * min_sub)
        TR = max(min_sub, min(fit, cap2, R_up))
        out = run_exact(TR)
    else:
        # Streaming path: N tiled along the trailing "arbitrary" axis.
        max_tr = max(min_sub, (block_elems // _LANE) // min_sub * min_sub)
        TR = max(min_sub, min(cap2, R_up, _round_up(64, min_sub), max_tr))
        TN = max(_LANE, (block_elems // TR) // _LANE * _LANE)
        if TN >= N:
            # Degenerate (tiny budget): one chunk already covers N -> exact path.
            out = run_exact(TR)
        else:
            n_chunks = pl.cdiv(N, TN)
            n_row_tiles = pl.cdiv(R, TR)
            kernel, scratch = _make_stream_kernel(entries, N, TN, n_chunks, TR)
            out = pl.pallas_call(
                kernel,
                out_shape=jax.ShapeDtypeStruct((R, K), x.dtype),
                grid_spec=pltpu.PrefetchScalarGridSpec(
                    num_scalar_prefetch=0,
                    grid=(n_row_tiles, n_chunks),
                    in_specs=[pl.BlockSpec((TR, TN), lambda r, n: (r, n))],
                    out_specs=pl.BlockSpec((TR, K), lambda r, n: (r, 0)),
                    scratch_shapes=scratch,
                ),
                compiler_params=pltpu.CompilerParams(
                    dimension_semantics=("parallel", "arbitrary"),
                    vmem_limit_bytes=_VMEM_LIMIT_BYTES,
                ),
            )(x2)

    return out.reshape(B, C, K)


# ----------------------------------------------------------------------------- reference
def _reference(x, code=DEFAULT_CODE):
    """Pure-JAX reference mirroring the PyTorch forward exactly."""
    om1 = jnp.mean(x, axis=2, keepdims=True)
    tmp = []
    for c in code:
        if c == "MAX":
            tmp.append(jnp.max(x, axis=2, keepdims=True))
        elif c[:2] == "OM":
            order = int(c[2:])
            tmp.append(jnp.mean(x ** order, axis=2, keepdims=True))
        elif c[:2] == "CM":
            order = int(c[2:])
            tmp.append(jnp.mean((x - om1) ** order, axis=2, keepdims=True))
    return jnp.concatenate(tmp, axis=2)


if __name__ == "__main__":
    key = jax.random.PRNGKey(0)
    k1, k2 = jax.random.split(key)

    # Test 1: small shape -> exact single-block path (exercises OM3 reconstruction).
    code1 = ["MAX", "OM1", "OM2", "OM3", "CM2", "CM3"]
    B, C, N = 2, 4, 16
    x = jax.random.normal(k1, (B, C, N), dtype=jnp.float32)
    out = jax.block_until_ready(statistician(x, code1))
    ref = jax.block_until_ready(_reference(x, code1))
    assert out.shape == (B, C, len(code1)), out.shape
    assert jnp.allclose(out, ref, atol=1e-5, rtol=1e-5), "exact-path mismatch"

    # Test 2: tiny block budget forces the streamed-over-N accumulator path
    # (TN=128, 4 chunks, ragged last chunk with 16 valid lanes -> masked strip).
    B2, C2, N2 = 2, 4, 400
    x2 = jax.random.normal(k2, (B2, C2, N2), dtype=jnp.float32)
    out2 = jax.block_until_ready(statistician(x2, DEFAULT_CODE, block_elems=1024))
    ref2 = jax.block_until_ready(_reference(x2, DEFAULT_CODE))
    assert out2.shape == (B2, C2, len(DEFAULT_CODE)), out2.shape
    assert jnp.allclose(out2, ref2, atol=1e-3, rtol=1e-3), "streaming-path mismatch"

    print("KERNEL_OK")
</pallas_src>

<mosaic_0001>
module attributes {stable_mosaic.version = 11 : i64} {
  func.func @kernel(%arg0: i32, %arg1: memref<8x16xf32, #tpu.memory_space<vmem>>, %arg2: memref<8x6xf32, #tpu.memory_space<vmem>>) attributes {dimension_semantics = [#tpu.dimension_semantics<parallel>], iteration_bounds = array<i64: 1>, scalar_prefetch = 0 : i64, scratch_operands = 0 : i64, tpu.core_type = #tpu.core_type<tc>, window_params = [{transform_indices = @transform_0, window_bounds = array<i64: 8, 16>}, {transform_indices = @transform_1, window_bounds = array<i64: 8, 6>}]} {
    %c0 = arith.constant 0 : index
    %c0_0 = arith.constant 0 : index
    %0 = vector.load %arg1[%c0, %c0_0] : memref<8x16xf32, #tpu.memory_space<vmem>>, vector<8x16xf32>
    %cst = arith.constant dense<0xFF800000> : vector<8xf32>
    %1 = vector.multi_reduction <maximumf>, %0, %cst [1] : vector<8x16xf32> to vector<8xf32>
    %2 = vector.shape_cast %1 : vector<8xf32> to vector<8x1xf32>
    %cst_1 = arith.constant dense<0.000000e+00> : vector<8xf32>
    %3 = vector.multi_reduction <add>, %0, %cst_1 [1] : vector<8x16xf32> to vector<8xf32>
    %4 = vector.shape_cast %3 : vector<8xf32> to vector<8x1xf32>
    %cst_2 = arith.constant 6.250000e-02 : f32
    %5 = vector.broadcast %cst_2 : f32 to vector<8x1xf32>
    %6 = arith.mulf %4, %5 : vector<8x1xf32>
    %7 = vector.broadcast %6 : vector<8x1xf32> to vector<8x16xf32>
    %8 = arith.subf %0, %7 : vector<8x16xf32>
    %9 = arith.mulf %8, %8 : vector<8x16xf32>
    %cst_3 = arith.constant dense<0.000000e+00> : vector<8xf32>
    %10 = vector.multi_reduction <add>, %9, %cst_3 [1] : vector<8x16xf32> to vector<8xf32>
    %11 = vector.shape_cast %10 : vector<8xf32> to vector<8x1xf32>
    %cst_4 = arith.constant 6.250000e-02 : f32
    %12 = vector.broadcast %cst_4 : f32 to vector<8x1xf32>
    %13 = arith.mulf %11, %12 : vector<8x1xf32>
    %14 = arith.mulf %9, %8 : vector<8x16xf32>
    %cst_5 = arith.constant dense<0.000000e+00> : vector<8xf32>
    %15 = vector.multi_reduction <add>, %14, %cst_5 [1] : vector<8x16xf32> to vector<8xf32>
    %16 = vector.shape_cast %15 : vector<8xf32> to vector<8x1xf32>
    %cst_6 = arith.constant 6.250000e-02 : f32
    %17 = vector.broadcast %cst_6 : f32 to vector<8x1xf32>
    %18 = arith.mulf %16, %17 : vector<8x1xf32>
    %c0_7 = arith.constant 0 : index
    %c0_8 = arith.constant 0 : index
    %19 = vector.load %arg2[%c0_7, %c0_8] : memref<8x6xf32, #tpu.memory_space<vmem>>, vector<8x1xf32>
    tpu.vector_store %arg2[%c0_7, %c0_8], %2 {strides = array<i32>} : memref<8x6xf32, #tpu.memory_space<vmem>>, vector<8x1xf32>,
    %c0_9 = arith.constant 0 : index
    %c1 = arith.constant 1 : index
    %20 = vector.load %arg2[%c0_9, %c1] : memref<8x6xf32, #tpu.memory_space<vmem>>, vector<8x1xf32>
    tpu.vector_store %arg2[%c0_9, %c1], %6 {strides = array<i32>} : memref<8x6xf32, #tpu.memory_space<vmem>>, vector<8x1xf32>,
    %21 = arith.mulf %6, %6 : vector<8x1xf32>
    %cst_10 = arith.constant 1.000000e+00 : f32
    %22 = vector.broadcast %cst_10 : f32 to vector<8x1xf32>
    %23 = arith.mulf %22, %21 : vector<8x1xf32>
    %24 = arith.addf %13, %23 : vector<8x1xf32>
    %c0_11 = arith.constant 0 : index
    %c2 = arith.constant 2 : index
    %25 = vector.load %arg2[%c0_11, %c2] : memref<8x6xf32, #tpu.memory_space<vmem>>, vector<8x1xf32>
    tpu.vector_store %arg2[%c0_11, %c2], %24 {strides = array<i32>} : memref<8x6xf32, #tpu.memory_space<vmem>>, vector<8x1xf32>,
    %cst_12 = arith.constant 3.000000e+00 : f32
    %26 = vector.broadcast %cst_12 : f32 to vector<8x1xf32>
    %27 = arith.mulf %26, %13 : vector<8x1xf32>
    %28 = arith.mulf %27, %6 : vector<8x1xf32>
    %29 = arith.addf %18, %28 : vector<8x1xf32>
    %30 = arith.mulf %6, %6 : vector<8x1xf32>
    %31 = arith.mulf %30, %6 : vector<8x1xf32>
    %cst_13 = arith.constant 1.000000e+00 : f32
    %32 = vector.broadcast %cst_13 : f32 to vector<8x1xf32>
    %33 = arith.mulf %32, %31 : vector<8x1xf32>
    %34 = arith.addf %29, %33 : vector<8x1xf32>
    %c0_14 = arith.constant 0 : index
    %c3 = arith.constant 3 : index
    %35 = vector.load %arg2[%c0_14, %c3] : memref<8x6xf32, #tpu.memory_space<vmem>>, vector<8x1xf32>
    tpu.vector_store %arg2[%c0_14, %c3], %34 {strides = array<i32>} : memref<8x6xf32, #tpu.memory_space<vmem>>, vector<8x1xf32>,
    %c0_15 = arith.constant 0 : index
    %c4 = arith.constant 4 : index
    %36 = vector.load %arg2[%c0_15, %c4] : memref<8x6xf32, #tpu.memory_space<vmem>>, vector<8x1xf32>
    tpu.vector_store %arg2[%c0_15, %c4], %13 {strides = array<i32>} : memref<8x6xf32, #tpu.memory_space<vmem>>, vector<8x1xf32>,
    %c0_16 = arith.constant 0 : index
    %c5 = arith.constant 5 : index
    %37 = vector.load %arg2[%c0_16, %c5] : memref<8x6xf32, #tpu.memory_space<vmem>>, vector<8x1xf32>
    tpu.vector_store %arg2[%c0_16, %c5], %18 {strides = array<i32>} : memref<8x6xf32, #tpu.memory_space<vmem>>, vector<8x1xf32>,
    return
  }
  func.func @transform_0(%arg0: i32) -> (i32, i32) {
    %c0_i32 = arith.constant 0 : i32
    %c0_i32_0 = arith.constant 0 : i32
    return %arg0, %c0_i32 : i32, i32
  }
  func.func @transform_1(%arg0: i32) -> (i32, i32) {
    %c0_i32 = arith.constant 0 : i32
    %c0_i32_0 = arith.constant 0 : i32
    return %arg0, %c0_i32 : i32, i32
  }
}

</mosaic_0001>

<llo_original>
// kernel: tpu_custom_call.1
$region0: #{tpu_custom_call.1}
  #allocation0 [shape = 'u32[]', space=smem, size = 0x4, offset = 0x4, fixed_abs, tag = 'smem constant byte address 0x4 - core index']
  #allocation1 [shape = 'u32[144,128]{1,0:T(1,128)}', space=vmem, size = 0x12000, scoped, tag = 'internal scratch']
  %s0 = inlined_call_operand.hbm [shape: f32[8,16], index: 0, kind: input, shape index: {}]
  %s1 = inlined_call_operand.hbm [shape: f32[8,6], index: 1, kind: output, shape index: {}]
  %s2 = sld [smem:[#allocation0]]
  $region18: #{tpu_custom_call.1} parent=0
    _
  %s4 = ssub.s32 1, %s2
  %s5 = scalar_select 0, %s4, %s2
  $region1: #{tpu_custom_call.1} parent=0
    #allocation2 [shape = 'u8[4096]{0}', space=vmem, size = 0x1000, scoped, tag = 'input window, operand 0, single buffered']
    #allocation3 [shape = 's32[1]{0}', space=sflag, size = 0x4, scoped, tag = 'scoped memory for tpu_custom_call.1']
    #allocation4 [shape = 's32[1]{0}', space=sflag, size = 0x4, scoped, tag = 'scoped memory for tpu_custom_call.1']
    #allocation5 [shape = 'u8[4096]{0}', space=vmem, size = 0x1000, scoped, tag = 'output window, operand 0, single buffered']
    %6 = vsyncpa [#allocation3], 0
    %7 = vsyncpa [#allocation4], 0
    // Predicated region
    $region2: #{tpu_custom_call.1} parent=1 // pred_check
      _
    $region3: #{tpu_custom_call.1} parent=1 // pred_check_branch
      %9 = sbr.rel (0) target = $region5
    $region4: #{tpu_custom_call.1} parent=1 // pred_region
      %s11 = ssub.s32 128, 128
      %12 = vsyncadd [#allocation3], %s11
      %s14 = sshll.u32 [#allocation2], 4
      %s15 = int_to_ptr.vmem [resolvable:$true] %s14
      %17 = dma.hbm_to_vmem [thread:$0]  %s0, 128, %s15, [#allocation3]
    $region5: #{tpu_custom_call.1} parent=1 // pred_fallthru
      _
    // Predicated region
    $region6: #{tpu_custom_call.1} parent=1 // pred_check
      _
    $region7: #{tpu_custom_call.1} parent=1 // pred_check_branch
      %19 = sbr.rel (0) target = $region9
    $region8: #{tpu_custom_call.1} parent=1 // pred_region
      %20 = dma.done [#allocation3], 128
    $region9: #{tpu_custom_call.1} parent=1 // pred_fallthru
      _
    %v21 = vld [vmem:[#allocation2] sm:$0xff]
    %vm22 = vcmask 130048
    %v23 = vsel %vm22, %v21, -inf
    %24 = vmax.xlane.f32.xlu0 %v23
    %v25 = vpop.xlane.xlu0 %24
    %v26 = vsel %vm22, %v21, 0.0
    %27 = vadd.xlane.f32.xlu0 %v26
    %v28 = vpop.xlane.xlu0 %27
    %v29 = vmul.f32 %v28, 0.0625
    %v30 = vsub.f32 %v21, %v29
    %v31 = vmul.f32 %v30, %v30
    %v32 = vsel %vm22, %v31, 0.0
    %33 = vadd.xlane.f32.xlu0 %v32
    %v34 = vpop.xlane.xlu0 %33
    %v35 = vmul.f32 %v34, 0.0625
    %v36 = vmul.f32 %v31, %v30
    %v37 = vsel %vm22, %v36, 0.0
    %38 = vadd.xlane.f32.xlu0 %v37
    %v39 = vpop.xlane.xlu0 %38
    %v40 = vmul.f32 %v39, 0.0625
    %vm41 = vcmask 7168
    %42 = vst.msk [vmem:[#allocation5] sm:$0xff] %vm41, %v25
    %vm43 = vcmask 15368
    %44 = vst.msk [vmem:[#allocation5] sm:$0xff] %vm43, %v29
    %v45 = vmul.f32 %v29, %v29
    %v46 = vadd.f32 %v35, %v45
    %vm47 = vcmask 23568
    %48 = vst.msk [vmem:[#allocation5] sm:$0xff] %vm47, %v46
    %v49 = vmul.f32 %v35, 3.0
    %v50 = vmul.f32 %v49, %v29
    %v51 = vadd.f32 %v40, %v50
    %v52 = vmul.f32 %v45, %v29
    %v53 = vadd.f32 %v51, %v52
    %vm54 = vcmask 31768
    %55 = vst.msk [vmem:[#allocation5] sm:$0xff] %vm54, %v53
    %vm56 = vcmask 39968
    %57 = vst.msk [vmem:[#allocation5] sm:$0xff] %vm56, %v35
    %vm58 = vcmask 48168
    %59 = vst.msk [vmem:[#allocation5] sm:$0xff] %vm58, %v40
    // Predicated region
    $region10: #{tpu_custom_call.1} parent=1 // pred_check
      _
    $region11: #{tpu_custom_call.1} parent=1 // pred_check_branch
      %61 = sbr.rel (0) target = $region13
    $region12: #{tpu_custom_call.1} parent=1 // pred_region
      %s63 = ssub.s32 128, 128
      %64 = vsyncadd [#allocation4], %s63
      %s66 = sshll.u32 [#allocation5], 4
      %s67 = int_to_ptr.vmem [resolvable:$true] %s66
      %69 = dma.vmem_to_hbm [thread:$0]  %s67, 128, %s1, [#allocation4]
    $region13: #{tpu_custom_call.1} parent=1 // pred_fallthru
      _
    // Predicated region
    $region14: #{tpu_custom_call.1} parent=1 // pred_check
      _
    $region15: #{tpu_custom_call.1} parent=1 // pred_check_branch
      %71 = sbr.rel (0) target = $region17
    $region16: #{tpu_custom_call.1} parent=1 // pred_region
      %72 = dma.done [#allocation4], 128
    $region17: #{tpu_custom_call.1} parent=1 // pred_fallthru
      _
    %73 = vsyncpa [#allocation3], 1
    %74 = vsyncpa [#allocation4], 1

</llo_original>
